<compile_context>
chip_gen: v7x
topology: tpu7x:2x2x1
jax: 0.10.0
libtpu: 0.0.40
codegen_flags: <defaults>
</compile_context>

<pallas_src>
import numpy as np
import jax
import jax.numpy as jnp
from jax.experimental import pallas as pl
from jax.experimental.pallas import tpu as pltpu

# ----------------- config (mirrors `args` of the PyTorch module) -----------
HIDDEN_SIZE = 32            # args.hidden_size  (conv in-channels / BN channels)
HW_SIZE     = 32            # args.h_w_wheels_joints_size (Linear in_features)
IMAGE_SIZE  = 16            # args.image_size
DIVISIONS   = 2             # args.divisions (PixelShuffle upscale factor)
EPISODES    = 2
STEPS       = 3

HD = IMAGE_SIZE // DIVISIONS                                 # 8
WD = IMAGE_SIZE // DIVISIONS                                 # 8
C_CONV_OUT = 4 * (1 if DIVISIONS == 1 else 2 ** DIVISIONS)   # 16
C_FINAL    = C_CONV_OUT // (DIVISIONS * DIVISIONS)           # 4
LIN_OUT    = HIDDEN_SIZE * HD * WD                           # 2048
ROW_IN     = WD * HIDDEN_SIZE                                # 256 lanes / image row (activation)
ROW_OUT    = WD * C_CONV_OUT                                 # 128 lanes / image row (conv out)
BN_EPS     = 1e-5


# =====================  the single fused kernel  ===========================
def fused_vision_out_kernel(x_ref, lw_ref, lb_ref, cb_ref, alpha_ref, wband_hbm,
                            o_ref, win_scr, wband_vmem, dma_sem):
    npad = x_ref.shape[0]                        # padded batch (multiple of 8)

    # Kick off the conv band-weight DMA immediately so it overlaps the Linear.
    # (grid=(1,) -> no auto-pipelining, BlockSpec would serialize this DMA.)
    band_cp = pltpu.make_async_copy(wband_hbm, wband_vmem, dma_sem)
    band_cp.start()

    # ---- Linear (BatchNorm folded into weights; columns in (h, w, ci) order) ----
    a = jnp.dot(x_ref[...].astype(jnp.bfloat16), lw_ref[...],
                preferred_element_type=jnp.float32) + lb_ref[...]    # (npad, 2048) f32

    # ---- PReLU (single learnable alpha, scalar from SMEM) ----
    alpha = alpha_ref[0]
    a = jnp.where(a > 0, a, alpha * a)
    # TODO(synk): Dropout is identity in eval mode; train-mode dropout not modeled.

    # ---- build the 8 overlapping reflect-padded conv windows -----------------
    # One (HD*npad, 3*ROW_IN) operand: row block y holds
    #   [ row refl(y-1) | row y | row refl(y+1) ]   for every batch element.
    # All slices are 256-lane / 8-sublane aligned -> pure VMEM copies, no relayout.
    win_scr[0:npad, 0:ROW_IN]          = a[:, ROW_IN:2 * ROW_IN]          # reflect: row 1
    win_scr[0:npad, ROW_IN:3 * ROW_IN] = a[:, 0:2 * ROW_IN]               # rows 0, 1
    for y in range(1, HD - 1):                                            # unrolled (6x)
        win_scr[y * npad:(y + 1) * npad, :] = a[:, (y - 1) * ROW_IN:(y + 2) * ROW_IN]
    last = (HD - 1) * npad
    win_scr[last:last + npad, 0:2 * ROW_IN] = a[:, (HD - 2) * ROW_IN:HD * ROW_IN]  # rows 6,7
    win_scr[last:last + npad, 2 * ROW_IN:3 * ROW_IN] = \
        a[:, (HD - 2) * ROW_IN:(HD - 1) * ROW_IN]                         # reflect: row 6

    # ---- whole reflect-pad 3x3 conv as ONE MXU matmul ------------------------
    band_cp.wait()
    conv = jnp.dot(win_scr[...].astype(jnp.bfloat16), wband_vmem[...],
                   preferred_element_type=jnp.float32) + cb_ref[...]      # (HD*npad, 128)

    # ---- Tanh, (v+1)/2, single lane-dense store ------------------------------
    o_ref[...] = (jnp.tanh(conv) + 1.0) * 0.5


# ============================  glue (plain JAX)  ===========================
def pixel_shuffle_from_nhwc(x, r):
    """x: (N, H, W, C*r*r) with PyTorch channel ordering -> (N, C, H*r, W*r)."""
    n, h, w, cr2 = x.shape
    c = cr2 // (r * r)
    x = x.reshape(n, h, w, c, r, r)
    x = x.transpose(0, 3, 1, 4, 2, 5)           # (N, C, H, r, W, r)
    return x.reshape(n, c, h * r, w * r)


@jax.jit
def vision_out_forward(h_w_wheels_joints, params):
    episodes, steps, _ = h_w_wheels_joints.shape
    n = episodes * steps
    npad = ((n + 7) // 8) * 8                    # full 8-sublane vregs everywhere
    # model_start('lin'): flatten (episodes, steps, F) -> (episodes*steps, F)
    x = h_w_wheels_joints.reshape(n, HW_SIZE).astype(jnp.float32)
    x = jnp.pad(x, ((0, npad - n), (0, 0)))

    y = pl.pallas_call(
        fused_vision_out_kernel,
        out_shape=jax.ShapeDtypeStruct((HD * npad, ROW_OUT), jnp.float32),
        grid=(1,),
        in_specs=[
            pl.BlockSpec((npad, HW_SIZE), lambda i: (0, 0)),
            pl.BlockSpec((HW_SIZE, LIN_OUT), lambda i: (0, 0)),
            pl.BlockSpec((1, LIN_OUT), lambda i: (0, 0)),
            pl.BlockSpec((1, ROW_OUT), lambda i: (0, 0)),            # conv bias row
            pl.BlockSpec(memory_space=pltpu.MemorySpace.SMEM),       # PReLU alpha
            pl.BlockSpec(memory_space=pl.ANY),                       # conv band (HBM, manual DMA)
        ],
        out_specs=pl.BlockSpec((HD * npad, ROW_OUT), lambda i: (0, 0)),
        scratch_shapes=[
            pltpu.VMEM((HD * npad, 3 * ROW_IN), jnp.float32),        # window operand
            pltpu.VMEM((3 * ROW_IN, ROW_OUT), jnp.bfloat16),         # band weights in VMEM
            pltpu.SemaphoreType.DMA(()),
        ],
        compiler_params=pltpu.CompilerParams(dimension_semantics=("arbitrary",)),
    )(x, params["lin_w"], params["lin_b"], params["conv_b_row"],
      params["prelu_alpha"], params["conv_w_mid"])

    # rows are ordered (image_row, batch); pure layout from here on.
    y = y.reshape(HD, npad, WD, C_CONV_OUT).transpose(1, 0, 2, 3)[:n]   # (n, HD, WD, Cout)
    vision = pixel_shuffle_from_nhwc(y, DIVISIONS)                      # (n, 4, IMG, IMG)
    # model_end('cnn'): restore (episodes, steps, C, H, W)
    return vision.reshape(episodes, steps, C_FINAL, IMAGE_SIZE, IMAGE_SIZE)


# =====================  parameter preparation (init time)  =================
def _build_conv_mid_band(conv_w_pt):
    """Fold the 3x3 conv (incl. horizontal reflect-pad) into one banded matrix.

    Activation window columns are ordered (row_section, w, ci); conv-output
    columns (x, co).  Vertical reflection is handled by the in-kernel window
    construction, so this single band serves every output image row.
    """
    wt = np.asarray(jax.device_get(conv_w_pt), np.float32)   # (co, ci, kh, kw)
    band = np.zeros((3 * ROW_IN, ROW_OUT), np.float32)

    def refl(t, nsz):
        if t < 0:
            return -t
        if t > nsz - 1:
            return 2 * (nsz - 1) - t
        return t

    for x in range(WD):
        for kh in range(3):
            for kw in range(3):
                w = refl(x + kw - 1, WD)
                r0 = kh * ROW_IN + w * HIDDEN_SIZE
                c0 = x * C_CONV_OUT
                # += : reflection can map two taps onto the same input pixel
                band[r0:r0 + HIDDEN_SIZE, c0:c0 + C_CONV_OUT] += wt[:, :, kh, kw].T
    return jnp.asarray(band)


def init_params(key):
    k1, k2, k3, k4 = jax.random.split(key, 4)
    # PyTorch-convention raw parameters, deterministically initialized in-script.
    lin_w_pt = jax.random.normal(k1, (LIN_OUT, HW_SIZE), jnp.float32) * 0.05
    lin_b_pt = jax.random.normal(k2, (LIN_OUT,), jnp.float32) * 0.05
    conv_w_pt = jax.random.normal(k3, (C_CONV_OUT, HIDDEN_SIZE, 3, 3), jnp.float32) * 0.05
    conv_b_pt = jax.random.normal(k4, (C_CONV_OUT,), jnp.float32) * 0.05

    # BatchNorm2d default init / running stats (inference mode) -> per-channel affine
    bn_scale = jnp.ones((HIDDEN_SIZE,), jnp.float32) / jnp.sqrt(1.0 + BN_EPS)
    bn_shift = jnp.zeros((HIDDEN_SIZE,), jnp.float32)

    # Fold BN into the Linear and permute output columns to (h, w, ci) NHWC order.
    lw = lin_w_pt.reshape(HIDDEN_SIZE, HD, WD, HW_SIZE).transpose(3, 1, 2, 0)  # (f,h,w,ci)
    lw = lw * bn_scale
    lb = lin_b_pt.reshape(HIDDEN_SIZE, HD, WD).transpose(1, 2, 0)              # (h,w,ci)
    lb = lb * bn_scale + bn_shift

    params = {
        "lin_w": lw.reshape(HW_SIZE, LIN_OUT).astype(jnp.bfloat16),
        "lin_b": lb.reshape(1, LIN_OUT),                                       # f32
        "conv_w_mid": _build_conv_mid_band(conv_w_pt).astype(jnp.bfloat16),
        "conv_b_row": jnp.tile(conv_b_pt, WD).reshape(1, ROW_OUT),             # f32
        "prelu_alpha": jnp.full((1,), 0.25, jnp.float32),                      # PReLU default
    }
    raw = {"lin_w_pt": lin_w_pt, "lin_b_pt": lin_b_pt,
           "conv_w_pt": conv_w_pt, "conv_b_pt": conv_b_pt,
           "bn_scale": bn_scale, "bn_shift": bn_shift}
    return params, raw


# ===============  plain-JAX reference of the PyTorch forward  ==============
def vision_out_reference(h_w_wheels_joints, raw):
    hp = jax.lax.Precision.HIGHEST
    episodes, steps, _ = h_w_wheels_joints.shape
    n = episodes * steps
    x = h_w_wheels_joints.reshape(n, HW_SIZE).astype(jnp.float32)
    a = jnp.einsum("nf,jf->nj", x, raw["lin_w_pt"], precision=hp) + raw["lin_b_pt"]
    a = a.reshape(n, HIDDEN_SIZE, HD, WD)                       # NCHW
    a = a * raw["bn_scale"][None, :, None, None] + raw["bn_shift"][None, :, None, None]
    a = jnp.where(a > 0, a, 0.25 * a)                           # PReLU
    ap = jnp.pad(a, ((0, 0), (0, 0), (1, 1), (1, 1)), mode="reflect")
    out = jnp.broadcast_to(raw["conv_b_pt"][None, :, None, None],
                           (n, C_CONV_OUT, HD, WD)).astype(jnp.float32)
    for kh in range(3):
        for kw in range(3):
            patch = ap[:, :, kh:kh + HD, kw:kw + WD]            # (n, ci, HD, WD)
            out = out + jnp.einsum("ncyx,oc->noyx", patch,
                                   raw["conv_w_pt"][:, :, kh, kw], precision=hp)
    v = (jnp.tanh(out) + 1.0) * 0.5
    v = v.reshape(n, C_FINAL, DIVISIONS, DIVISIONS, HD, WD)     # PixelShuffle (NCHW)
    v = v.transpose(0, 1, 4, 2, 5, 3)
    v = v.reshape(n, C_FINAL, IMAGE_SIZE, IMAGE_SIZE)
    return v.reshape(episodes, steps, C_FINAL, IMAGE_SIZE, IMAGE_SIZE)


if __name__ == "__main__":
    key = jax.random.PRNGKey(0)
    k_param, k_in = jax.random.split(key)
    params, raw = init_params(k_param)
    h_w_wheels_joints = jax.random.normal(
        k_in, (EPISODES, STEPS, HW_SIZE), jnp.float32)

    vision = vision_out_forward(h_w_wheels_joints, params)
    vision = jax.block_until_ready(vision)

    assert vision.shape == (EPISODES, STEPS, C_FINAL, IMAGE_SIZE, IMAGE_SIZE)
    assert bool(jnp.all(jnp.isfinite(vision)))

    # numerical cross-check vs an independent plain-JAX implementation
    # (weights are stored/computed in bf16 in the kernel, hence the tolerance).
    ref = vision_out_reference(h_w_wheels_joints, raw)
    err = float(jnp.max(jnp.abs(vision - ref)))
    assert err < 2e-2, f"max abs error vs reference: {err}"

    print("KERNEL_OK")
</pallas_src>

<mosaic_0001>
module attributes {stable_mosaic.version = 11 : i64} {
  func.func @fused_vision_out_kernel(%arg0: i32, %arg1: memref<8x32xf32, #tpu.memory_space<vmem>>, %arg2: memref<32x2048xbf16, #tpu.memory_space<vmem>>, %arg3: memref<1x2048xf32, #tpu.memory_space<vmem>>, %arg4: memref<1x128xf32, #tpu.memory_space<vmem>>, %arg5: memref<1xf32, #tpu.memory_space<smem>>, %arg6: memref<768x128xbf16, #tpu.memory_space<any>>, %arg7: memref<64x128xf32, #tpu.memory_space<vmem>>, %arg8: memref<64x768xf32, #tpu.memory_space<vmem>>, %arg9: memref<768x128xbf16, #tpu.memory_space<vmem>>, %arg10: memref<!tpu.dma_semaphore, #tpu.memory_space<semaphore_mem>>) attributes {dimension_semantics = [#tpu.dimension_semantics<arbitrary>], iteration_bounds = array<i64: 1>, scalar_prefetch = 0 : i64, scratch_operands = 3 : i64, tpu.core_type = #tpu.core_type<tc>, window_params = [{pipeline_mode = #tpu.pipeline_mode<synchronous>, transform_indices = @transform_0, window_bounds = array<i64: 8, 32>}, {pipeline_mode = #tpu.pipeline_mode<synchronous>, transform_indices = @transform_1, window_bounds = array<i64: 32, 2048>}, {pipeline_mode = #tpu.pipeline_mode<synchronous>, transform_indices = @transform_2, window_bounds = array<i64: 1, 2048>}, {pipeline_mode = #tpu.pipeline_mode<synchronous>, transform_indices = @transform_3, window_bounds = array<i64: 1, 128>}, {transform_indices = @transform_4, window_bounds = array<i64: 1>}, {}, {pipeline_mode = #tpu.pipeline_mode<synchronous>, transform_indices = @transform_6, window_bounds = array<i64: 64, 128>}]} {
    tpu.enqueue_dma source(%arg6 : memref<768x128xbf16, #tpu.memory_space<any>>) target(%arg9 : memref<768x128xbf16, #tpu.memory_space<vmem>>) target_semaphore(%arg10 : memref<!tpu.dma_semaphore, #tpu.memory_space<semaphore_mem>>)
    %c0 = arith.constant 0 : index
    %c0_0 = arith.constant 0 : index
    %0 = vector.load %arg1[%c0, %c0_0] : memref<8x32xf32, #tpu.memory_space<vmem>>, vector<8x32xf32>
    %1 = arith.truncf %0 : vector<8x32xf32> to vector<8x32xbf16>
    %c0_1 = arith.constant 0 : index
    %c0_2 = arith.constant 0 : index
    %2 = vector.load %arg2[%c0_1, %c0_2] : memref<32x2048xbf16, #tpu.memory_space<vmem>>, vector<32x2048xbf16>
    %cst = arith.constant dense<0.000000e+00> : vector<8x2048xf32>
    %3 = tpu.matmul %1, %2, %cst {dimension_numbers = #tpu.dot_dimension_numbers<[1], [0], [0], [1], [0, 0, 1, 1], [], []>} : vector<8x32xbf16>, vector<32x2048xbf16>, vector<8x2048xf32> -> vector<8x2048xf32>
    %c0_3 = arith.constant 0 : index
    %c0_4 = arith.constant 0 : index
    %4 = vector.load %arg3[%c0_3, %c0_4] : memref<1x2048xf32, #tpu.memory_space<vmem>>, vector<1x2048xf32>
    %5 = vector.broadcast %4 : vector<1x2048xf32> to vector<8x2048xf32>
    %6 = arith.addf %3, %5 : vector<8x2048xf32>
    %c0_5 = arith.constant 0 : index
    %7 = memref.load %arg5[%c0_5] : memref<1xf32, #tpu.memory_space<smem>>
    %cst_6 = arith.constant 0.000000e+00 : f32
    %8 = vector.broadcast %cst_6 : f32 to vector<8x2048xf32>
    %9 = arith.cmpf ogt, %6, %8 : vector<8x2048xf32>
    %10 = vector.broadcast %7 : f32 to vector<8x2048xf32>
    %11 = arith.mulf %10, %6 : vector<8x2048xf32>
    %12 = arith.select %9, %6, %11 : vector<8x2048xi1>, vector<8x2048xf32>
    %13 = vector.extract_strided_slice %12 {offsets = [0, 256], sizes = [8, 256], strides = [1, 1]} : vector<8x2048xf32> to vector<8x256xf32>
    %c0_7 = arith.constant 0 : index
    %c0_8 = arith.constant 0 : index
    %14 = vector.load %arg8[%c0_7, %c0_8] : memref<64x768xf32, #tpu.memory_space<vmem>>, vector<8x256xf32>
    tpu.vector_store %arg8[%c0_7, %c0_8], %13 {strides = array<i32>} : memref<64x768xf32, #tpu.memory_space<vmem>>, vector<8x256xf32>,
    %15 = vector.extract_strided_slice %12 {offsets = [0, 0], sizes = [8, 512], strides = [1, 1]} : vector<8x2048xf32> to vector<8x512xf32>
    %c0_9 = arith.constant 0 : index
    %c256 = arith.constant 256 : index
    %16 = vector.load %arg8[%c0_9, %c256] : memref<64x768xf32, #tpu.memory_space<vmem>>, vector<8x512xf32>
    tpu.vector_store %arg8[%c0_9, %c256], %15 {strides = array<i32>} : memref<64x768xf32, #tpu.memory_space<vmem>>, vector<8x512xf32>,
    %17 = vector.extract_strided_slice %12 {offsets = [0, 0], sizes = [8, 768], strides = [1, 1]} : vector<8x2048xf32> to vector<8x768xf32>
    %c8 = arith.constant 8 : index
    %c0_10 = arith.constant 0 : index
    %18 = vector.load %arg8[%c8, %c0_10] : memref<64x768xf32, #tpu.memory_space<vmem>>, vector<8x768xf32>
    tpu.vector_store %arg8[%c8, %c0_10], %17 {strides = array<i32>} : memref<64x768xf32, #tpu.memory_space<vmem>>, vector<8x768xf32>,
    %19 = vector.extract_strided_slice %12 {offsets = [0, 256], sizes = [8, 768], strides = [1, 1]} : vector<8x2048xf32> to vector<8x768xf32>
    %c16 = arith.constant 16 : index
    %c0_11 = arith.constant 0 : index
    %20 = vector.load %arg8[%c16, %c0_11] : memref<64x768xf32, #tpu.memory_space<vmem>>, vector<8x768xf32>
    tpu.vector_store %arg8[%c16, %c0_11], %19 {strides = array<i32>} : memref<64x768xf32, #tpu.memory_space<vmem>>, vector<8x768xf32>,
    %21 = vector.extract_strided_slice %12 {offsets = [0, 512], sizes = [8, 768], strides = [1, 1]} : vector<8x2048xf32> to vector<8x768xf32>
    %c24 = arith.constant 24 : index
    %c0_12 = arith.constant 0 : index
    %22 = vector.load %arg8[%c24, %c0_12] : memref<64x768xf32, #tpu.memory_space<vmem>>, vector<8x768xf32>
    tpu.vector_store %arg8[%c24, %c0_12], %21 {strides = array<i32>} : memref<64x768xf32, #tpu.memory_space<vmem>>, vector<8x768xf32>,
    %23 = vector.extract_strided_slice %12 {offsets = [0, 768], sizes = [8, 768], strides = [1, 1]} : vector<8x2048xf32> to vector<8x768xf32>
    %c32 = arith.constant 32 : index
    %c0_13 = arith.constant 0 : index
    %24 = vector.load %arg8[%c32, %c0_13] : memref<64x768xf32, #tpu.memory_space<vmem>>, vector<8x768xf32>
    tpu.vector_store %arg8[%c32, %c0_13], %23 {strides = array<i32>} : memref<64x768xf32, #tpu.memory_space<vmem>>, vector<8x768xf32>,
    %25 = vector.extract_strided_slice %12 {offsets = [0, 1024], sizes = [8, 768], strides = [1, 1]} : vector<8x2048xf32> to vector<8x768xf32>
    %c40 = arith.constant 40 : index
    %c0_14 = arith.constant 0 : index
    %26 = vector.load %arg8[%c40, %c0_14] : memref<64x768xf32, #tpu.memory_space<vmem>>, vector<8x768xf32>
    tpu.vector_store %arg8[%c40, %c0_14], %25 {strides = array<i32>} : memref<64x768xf32, #tpu.memory_space<vmem>>, vector<8x768xf32>,
    %27 = vector.extract_strided_slice %12 {offsets = [0, 1280], sizes = [8, 768], strides = [1, 1]} : vector<8x2048xf32> to vector<8x768xf32>
    %c48 = arith.constant 48 : index
    %c0_15 = arith.constant 0 : index
    %28 = vector.load %arg8[%c48, %c0_15] : memref<64x768xf32, #tpu.memory_space<vmem>>, vector<8x768xf32>
    tpu.vector_store %arg8[%c48, %c0_15], %27 {strides = array<i32>} : memref<64x768xf32, #tpu.memory_space<vmem>>, vector<8x768xf32>,
    %29 = vector.extract_strided_slice %12 {offsets = [0, 1536], sizes = [8, 512], strides = [1, 1]} : vector<8x2048xf32> to vector<8x512xf32>
    %c56 = arith.constant 56 : index
    %c0_16 = arith.constant 0 : index
    %30 = vector.load %arg8[%c56, %c0_16] : memref<64x768xf32, #tpu.memory_space<vmem>>, vector<8x512xf32>
    tpu.vector_store %arg8[%c56, %c0_16], %29 {strides = array<i32>} : memref<64x768xf32, #tpu.memory_space<vmem>>, vector<8x512xf32>,
    %31 = vector.extract_strided_slice %12 {offsets = [0, 1536], sizes = [8, 256], strides = [1, 1]} : vector<8x2048xf32> to vector<8x256xf32>
    %c56_17 = arith.constant 56 : index
    %c512 = arith.constant 512 : index
    %32 = vector.load %arg8[%c56_17, %c512] : memref<64x768xf32, #tpu.memory_space<vmem>>, vector<8x256xf32>
    tpu.vector_store %arg8[%c56_17, %c512], %31 {strides = array<i32>} : memref<64x768xf32, #tpu.memory_space<vmem>>, vector<8x256xf32>,
    tpu.wait_dma2 semaphore(%arg10 : memref<!tpu.dma_semaphore, #tpu.memory_space<semaphore_mem>>) src(%arg6 : memref<768x128xbf16, #tpu.memory_space<any>>) dst(%arg9 : memref<768x128xbf16, #tpu.memory_space<vmem>>)
    %c0_18 = arith.constant 0 : index
    %c0_19 = arith.constant 0 : index
    %33 = vector.load %arg8[%c0_18, %c0_19] : memref<64x768xf32, #tpu.memory_space<vmem>>, vector<64x768xf32>
    %34 = arith.truncf %33 : vector<64x768xf32> to vector<64x768xbf16>
    %c0_20 = arith.constant 0 : index
    %c0_21 = arith.constant 0 : index
    %35 = vector.load %arg9[%c0_20, %c0_21] : memref<768x128xbf16, #tpu.memory_space<vmem>>, vector<768x128xbf16>
    %cst_22 = arith.constant dense<0.000000e+00> : vector<64x128xf32>
    %36 = tpu.matmul %34, %35, %cst_22 {dimension_numbers = #tpu.dot_dimension_numbers<[1], [0], [0], [1], [0, 0, 1, 1], [], []>} : vector<64x768xbf16>, vector<768x128xbf16>, vector<64x128xf32> -> vector<64x128xf32>
    %c0_23 = arith.constant 0 : index
    %c0_24 = arith.constant 0 : index
    %37 = vector.load %arg4[%c0_23, %c0_24] : memref<1x128xf32, #tpu.memory_space<vmem>>, vector<1x128xf32>
    %38 = vector.broadcast %37 : vector<1x128xf32> to vector<64x128xf32>
    %39 = arith.addf %36, %38 : vector<64x128xf32>
    %40 = math.tanh %39 : vector<64x128xf32>
    %cst_25 = arith.constant 1.000000e+00 : f32
    %41 = vector.broadcast %cst_25 : f32 to vector<64x128xf32>
    %42 = arith.addf %40, %41 : vector<64x128xf32>
    %cst_26 = arith.constant 5.000000e-01 : f32
    %43 = vector.broadcast %cst_26 : f32 to vector<64x128xf32>
    %44 = arith.mulf %42, %43 : vector<64x128xf32>
    %c0_27 = arith.constant 0 : index
    %c0_28 = arith.constant 0 : index
    %45 = vector.load %arg7[%c0_27, %c0_28] : memref<64x128xf32, #tpu.memory_space<vmem>>, vector<64x128xf32>
    tpu.vector_store %arg7[%c0_27, %c0_28], %44 {strides = array<i32>} : memref<64x128xf32, #tpu.memory_space<vmem>>, vector<64x128xf32>,
    return
  }
  func.func @transform_0(%arg0: i32) -> (i32, i32) {
    %c0_i32 = arith.constant 0 : i32
    %c0_i32_0 = arith.constant 0 : i32
    %c0_i32_1 = arith.constant 0 : i32
    return %c0_i32, %c0_i32_0 : i32, i32
  }
  func.func @transform_1(%arg0: i32) -> (i32, i32) {
    %c0_i32 = arith.constant 0 : i32
    %c0_i32_0 = arith.constant 0 : i32
    %c0_i32_1 = arith.constant 0 : i32
    return %c0_i32, %c0_i32_0 : i32, i32
  }
  func.func @transform_2(%arg0: i32) -> (i32, i32) {
    %c0_i32 = arith.constant 0 : i32
    %c0_i32_0 = arith.constant 0 : i32
    %c0_i32_1 = arith.constant 0 : i32
    return %c0_i32, %c0_i32_0 : i32, i32
  }
  func.func @transform_3(%arg0: i32) -> (i32, i32) {
    %c0_i32 = arith.constant 0 : i32
    %c0_i32_0 = arith.constant 0 : i32
    %c0_i32_1 = arith.constant 0 : i32
    return %c0_i32, %c0_i32_0 : i32, i32
  }
  func.func @transform_4(%arg0: i32) -> i32 {
    %c0_i32 = arith.constant 0 : i32
    %c0_i32_0 = arith.constant 0 : i32
    return %c0_i32 : i32
  }
  func.func @transform_6(%arg0: i32) -> (i32, i32) {
    %c0_i32 = arith.constant 0 : i32
    %c0_i32_0 = arith.constant 0 : i32
    %c0_i32_1 = arith.constant 0 : i32
    return %c0_i32, %c0_i32_0 : i32, i32
  }
}

</mosaic_0001>

<llo_original>
// kernel: vision_out_forward.1
$region0: #{vision_out_forward.1}
  #allocation0 [shape = 'u32[]', space=smem, size = 0x4, offset = 0x4, fixed_abs, tag = 'smem constant byte address 0x4 - core index']
  #allocation1 [shape = 'u32[144,128]{1,0:T(1,128)}', space=vmem, size = 0x12000, scoped, tag = 'internal scratch']
  #allocation2 [shape = 'f32[64,768]{1,0:T(8,128)}', space=vmem, size = 0x30000, scoped, tag = 'scratch operand']
  #allocation3 [shape = 'bf16[768,128]{1,0:T(16,128)(2,1)}', space=vmem, size = 0x30000, scoped, tag = 'scratch operand']
  #allocation4 [shape = 's32[1]{0}', space=sflag, size = 0x4, scoped, tag = 'scratch operand']
  #allocation5 [shape = 'f32[1]{0:T(128)S(6)}', space=smem, size = 0x200, scoped, tag = 'scoped memory for vision_out_forward.1']
  #allocation8 [shape = 's32[]', space=sflag, size = 0x4, offset = 0, fixed_abs, tag = 'sflag constant byte address 0x0 - dummy sync flag']
  #allocation9 [shape = 's32[]', space=sflag, size = 0x4, offset = 0, fixed_abs, tag = 'sflag constant byte address 0x0 - dummy sync flag']
  #allocation10 [shape = 'u32[]', space=smem, size = 0x4, offset = 0x44, fixed_abs, tag = 'smem constant byte address 0x44 - assertion arg 0']
  #allocation11 [shape = 'u32[]', space=smem, size = 0x4, offset = 0x48, fixed_abs, tag = 'smem constant byte address 0x48 - assertion arg 1']
  %s0 = inlined_call_operand.vmem [shape: f32[8,32], index: 0, kind: input, shape index: {}]
  %s1 = inlined_call_operand.hbm [shape: bf16[32,2048], index: 1, kind: input, shape index: {}]
  %s2 = inlined_call_operand.vmem [shape: f32[1,2048], index: 2, kind: input, shape index: {}]
  %s3 = inlined_call_operand.vmem [shape: f32[1,128], index: 3, kind: input, shape index: {}]
  %s4 = inlined_call_operand.<no memory space> [shape: f32[1], index: 4, kind: input, shape index: {}]
  %s5 = inlined_call_operand.hbm [shape: bf16[768,128], index: 5, kind: input, shape index: {}]
  %s6 = inlined_call_operand.vmem [shape: f32[64,128], index: 6, kind: output, shape index: {}]
  %s7 = sld [smem:[#allocation0]]
  $region38: #{vision_out_forward.1} parent=0
    _
  %s9 = ssub.s32 1, %s7
  %s10 = scalar_select 0, %s9, %s7
  %11 = sst [smem:[#allocation5]] %s4
  $region1: #{vision_out_forward.1} parent=0
    #allocation6 [shape = 'u8[131072]{0}', space=vmem, size = 0x20000, scoped, tag = 'input window, operand 1, single buffered']
    #allocation7 [shape = 's32[1]{0}', space=sflag, size = 0x4, scoped, tag = 'scoped memory for vision_out_forward.1']
    %12 = vsyncpa [#allocation7], 0
    // Predicated region
    $region2: #{vision_out_forward.1} parent=1 // pred_check
      _
    $region3: #{vision_out_forward.1} parent=1 // pred_check_branch
      %14 = sbr.rel (0) target = $region5
    $region4: #{vision_out_forward.1} parent=1 // pred_region
      _
    $region5: #{vision_out_forward.1} parent=1 // pred_fallthru
      _
    // Predicated region
    $region6: #{vision_out_forward.1} parent=1 // pred_check
      _
    $region7: #{vision_out_forward.1} parent=1 // pred_check_branch
      %16 = sbr.rel (0) target = $region9
    $region8: #{vision_out_forward.1} parent=1 // pred_region
      %s18 = ssub.s32 4096, 4096
      %19 = vsyncadd [#allocation7], %s18
      %s20 = sshll.u32 [#allocation6], 4
      %s21 = int_to_ptr.vmem [resolvable:$true] %s20
      %26 = dma.hbm_to_vmem [thread:$0]  %s1, 4096, %s21, [#allocation7], 1024, 1024, 64
    $region9: #{vision_out_forward.1} parent=1 // pred_fallthru
      _
    // Predicated region
    $region10: #{vision_out_forward.1} parent=1 // pred_check
      _
    $region11: #{vision_out_forward.1} parent=1 // pred_check_branch
      %28 = sbr.rel (0) target = $region13
    $region12: #{vision_out_forward.1} parent=1 // pred_region
      _
    $region13: #{vision_out_forward.1} parent=1 // pred_fallthru
      _
    // Predicated region
    $region14: #{vision_out_forward.1} parent=1 // pred_check
      _
    $region15: #{vision_out_forward.1} parent=1 // pred_check_branch
      %30 = sbr.rel (0) target = $region17
    $region16: #{vision_out_forward.1} parent=1 // pred_region
      _
    $region17: #{vision_out_forward.1} parent=1 // pred_fallthru
      _
    // Predicated region
    $region18: #{vision_out_forward.1} parent=1 // pred_check
      _
    $region19: #{vision_out_forward.1} parent=1 // pred_check_branch
      %32 = sbr.rel (0) target = $region21
    $region20: #{vision_out_forward.1} parent=1 // pred_region
      _
    $region21: #{vision_out_forward.1} parent=1 // pred_fallthru
      _
    // Predicated region
    $region22: #{vision_out_forward.1} parent=1 // pred_check
      _
    $region23: #{vision_out_forward.1} parent=1 // pred_check_branch
      %34 = sbr.rel (0) target = $region25
    $region24: #{vision_out_forward.1} parent=1 // pred_region
      %35 = dma.done [#allocation7], 4096
    $region25: #{vision_out_forward.1} parent=1 // pred_fallthru
      _
    // Predicated region
    $region26: #{vision_out_forward.1} parent=1 // pred_check
      _
    $region27: #{vision_out_forward.1} parent=1 // pred_check_branch
      %38 = sbr.rel target = $region29
    $region28: #{vision_out_forward.1} parent=1 // pred_region
      %39 = sst [smem:[#allocation10]] [#allocation9]
      %40 = sst [smem:[#allocation11]] [#allocation8]
    $region29: #{vision_out_forward.1} parent=1 // pred_fallthru
      _
    %42 = shalt.err (0)
    %s44 = sshll.u32 [#allocation3], 4
    %s45 = int_to_ptr.vmem [resolvable:$true] %s44
    %47 = dma.hbm_to_vmem [thread:$0]  %s5, 6144, %s45, [#allocation4]
    %v48 = vld [vmem:[%s0] sm:$0xff]
    %v49 = vpack.c.bf16 %v48, %v48
    %v50 = vld [vmem:[#allocation6] sm:$0xff]
    %v51 = vld [vmem:[#allocation6 + $0x8] sm:$0xff]
    %v52 = vld [vmem:[#allocation6 + $0x10] sm:$0xff]
    %v53 = vld [vmem:[#allocation6 + $0x18] sm:$0xff]
    %v54 = vld [vmem:[#allocation6 + $0x20] sm:$0xff]
    %v55 = vld [vmem:[#allocation6 + $0x28] sm:$0xff]
    %v56 = vld [vmem:[#allocation6 + $0x30] sm:$0xff]
    %v57 = vld [vmem:[#allocation6 + $0x38] sm:$0xff]
    %v58 = vld [vmem:[#allocation6 + $0x40] sm:$0xff]
    %v59 = vld [vmem:[#allocation6 + $0x48] sm:$0xff]
    %v60 = vld [vmem:[#allocation6 + $0x50] sm:$0xff]
    %v61 = vld [vmem:[#allocation6 + $0x58] sm:$0xff]
    %v62 = vld [vmem:[#allocation6 + $0x60] sm:$0xff]
    %v63 = vld [vmem:[#allocation6 + $0x68] sm:$0xff]
    %v64 = vld [vmem:[#allocation6 + $0x70] sm:$0xff]
    %v65 = vld [vmem:[#allocation6 + $0x78] sm:$0xff]
    %v66 = vld [vmem:[#allocation6 + $0x80] sm:$0xff]
    %v67 = vld [vmem:[#allocation6 + $0x88] sm:$0xff]
    %v68 = vld [vmem:[#allocation6 + $0x90] sm:$0xff]
    %v69 = vld [vmem:[#allocation6 + $0x98] sm:$0xff]
    %v70 = vld [vmem:[#allocation6 + $0xa0] sm:$0xff]
    %v71 = vld [vmem:[#allocation6 + $0xa8] sm:$0xff]
    %v72 = vld [vmem:[#allocation6 + $0xb0] sm:$0xff]
    %v73 = vld [vmem:[#allocation6 + $0xb8] sm:$0xff]
    %v74 = vld [vmem:[#allocation6 + $0xc0] sm:$0xff]
    %v75 = vld [vmem:[#allocation6 + $0xc8] sm:$0xff]
    %v76 = vld [vmem:[#allocation6 + $0xd0] sm:$0xff]
    %v77 = vld [vmem:[#allocation6 + $0xd8] sm:$0xff]
    %v78 = vld [vmem:[#allocation6 + $0xe0] sm:$0xff]
    %v79 = vld [vmem:[#allocation6 + $0xe8] sm:$0xff]
    %v80 = vld [vmem:[#allocation6 + $0xf0] sm:$0xff]
    %v81 = vld [vmem:[#allocation6 + $0xf8] sm:$0xff]
    %v82 = vld [vmem:[%s2] sm:$0xff]
    %v83 = vld [vmem:[%s2 + $0x8] sm:$0xff]
    %v86 = vlaneseq
    %v87 = vshrl.u32 %v86, 7
    %v88 = vsub.s32 0, %v87
    %v89 = vrot.slane %v82, %v88
    %v90 = vlaneseq
    %v91 = vshrl.u32 %v90, 7
    %v92 = vsub.s32 1, %v91
    %v93 = vrot.slane %v82, %v92
    %v94 = vlaneseq
    %v95 = vshrl.u32 %v94, 7
    %v96 = vsub.s32 2, %v95
    %v97 = vrot.slane %v82, %v96
    %v98 = vlaneseq
    %v99 = vshrl.u32 %v98, 7
    %v100 = vsub.s32 3, %v99
    %v101 = vrot.slane %v82, %v100
    %v102 = vlaneseq
    %v103 = vshrl.u32 %v102, 7
    %v104 = vsub.s32 4, %v103
    %v105 = vrot.slane %v82, %v104
    %v106 = vlaneseq
    %v107 = vshrl.u32 %v106, 7
    %v108 = vsub.s32 5, %v107
    %v109 = vrot.slane %v82, %v108
    %v110 = vlaneseq
    %v111 = vshrl.u32 %v110, 7
    %v112 = vsub.s32 6, %v111
    %v113 = vrot.slane %v82, %v112
    %v114 = vlaneseq
    %v115 = vshrl.u32 %v114, 7
    %v116 = vsub.s32 7, %v115
    %v117 = vrot.slane %v82, %v116
    %v118 = vlaneseq
    %v119 = vshrl.u32 %v118, 7
    %v120 = vsub.s32 0, %v119
    %v121 = vrot.slane %v83, %v120
    %v122 = vlaneseq
    %v123 = vshrl.u32 %v122, 7
    %v124 = vsub.s32 1, %v123
    %v125 = vrot.slane %v83, %v124
    %v126 = vlaneseq
    %v127 = vshrl.u32 %v126, 7
    %v128 = vsub.s32 2, %v127
    %v129 = vrot.slane %v83, %v128
    %v130 = vlaneseq
    %v131 = vshrl.u32 %v130, 7
    %v132 = vsub.s32 3, %v131
    %v133 = vrot.slane %v83, %v132
    %v134 = vlaneseq
    %v135 = vshrl.u32 %v134, 7
    %v136 = vsub.s32 4, %v135
    %v137 = vrot.slane %v83, %v136
    %v138 = vlaneseq
    %v139 = vshrl.u32 %v138, 7
    %v140 = vsub.s32 5, %v139
    %v141 = vrot.slane %v83, %v140
    %v142 = vlaneseq
    %v143 = vshrl.u32 %v142, 7
    %v144 = vsub.s32 6, %v143
    %v145 = vrot.slane %v83, %v144
    %v146 = vlaneseq
    %v147 = vshrl.u32 %v146, 7
    %v148 = vsub.s32 7, %v147
    %v149 = vrot.slane %v83, %v148
    %v198 = vunpack.c.l.b16 %v50
    %v199 = vunpack.c.h.b16 %v50
    %v200 = vunpack.c.l.b16 %v51
    %v201 = vunpack.c.h.b16 %v51
    %v202 = vunpack.c.l.b16 %v52
    %v203 = vunpack.c.h.b16 %v52
    %v204 = vunpack.c.l.b16 %v53
    %v205 = vunpack.c.h.b16 %v53
    %v206 = vunpack.c.l.b16 %v54
    %v207 = vunpack.c.h.b16 %v54
    %v208 = vunpack.c.l.b16 %v55
    %v209 = vunpack.c.h.b16 %v55
    %v210 = vunpack.c.l.b16 %v56
    %v211 = vunpack.c.h.b16 %v56
    %v212 = vunpack.c.l.b16 %v57
    %v213 = vunpack.c.h.b16 %v57
    %v214 = vunpack.c.l.b16 %v58
    %v215 = vunpack.c.h.b16 %v58
    %v216 = vunpack.c.l.b16 %v59
    %v217 = vunpack.c.h.b16 %v59
    %v218 = vunpack.c.l.b16 %v60
    %v219 = vunpack.c.h.b16 %v60
    %v220 = vunpack.c.l.b16 %v61
    %v221 = vunpack.c.h.b16 %v61
    %v222 = vunpack.c.l.b16 %v62
    %v223 = vunpack.c.h.b16 %v62
    %v224 = vunpack.c.l.b16 %v63
    %v225 = vunpack.c.h.b16 %v63
    %v226 = vunpack.c.l.b16 %v64
    %v227 = vunpack.c.h.b16 %v64
    %v228 = vunpack.c.l.b16 %v65
    %v229 = vunpack.c.h.b16 %v65
    %v230 = vunpack.c.l.b16 %v66
    %v231 = vunpack.c.h.b16 %v66
    %v232 = vunpack.c.l.b16 %v67
    %v233 = vunpack.c.h.b16 %v67
    %v234 = vunpack.c.l.b16 %v68
    %v235 = vunpack.c.h.b16 %v68
    %v236 = vunpack.c.l.b16 %v69
    %v237 = vunpack.c.h.b16 %v69
    %v238 = vunpack.c.l.b16 %v70
    %v239 = vunpack.c.h.b16 %v70
    %v240 = vunpack.c.l.b16 %v71
    %v241 = vunpack.c.h.b16 %v71
    %v242 = vunpack.c.l.b16 %v72
    %v243 = vunpack.c.h.b16 %v72
    %v244 = vunpack.c.l.b16 %v73
    %v245 = vunpack.c.h.b16 %v73
    %v246 = vunpack.c.l.b16 %v74
    %v247 = vunpack.c.h.b16 %v74
    %v248 = vunpack.c.l.b16 %v75
    %v249 = vunpack.c.h.b16 %v75
    %v250 = vunpack.c.l.b16 %v76
    %v251 = vunpack.c.h.b16 %v76
    %v252 = vunpack.c.l.b16 %v77
    %v253 = vunpack.c.h.b16 %v77
    %v254 = vunpack.c.l.b16 %v78
    %v255 = vunpack.c.h.b16 %v78
    %v256 = vunpack.c.l.b16 %v79
    %v257 = vunpack.c.h.b16 %v79
    %v258 = vunpack.c.l.b16 %v80
    %v259 = vunpack.c.h.b16 %v80
    %v260 = vunpack.c.l.b16 %v81
    %v261 = vunpack.c.h.b16 %v81
    %v262 = vpack.c.b16 %v214, %v198
    %v263 = vpack.c.b16 %v215, %v199
    %v264 = vpack.c.b16 %v216, %v200
    %v265 = vpack.c.b16 %v217, %v201
    %v266 = vpack.c.b16 %v218, %v202
    %v267 = vpack.c.b16 %v219, %v203
    %v268 = vpack.c.b16 %v220, %v204
    %v269 = vpack.c.b16 %v221, %v205
    %v270 = vpack.c.b16 %v222, %v206
    %v271 = vpack.c.b16 %v223, %v207
    %v272 = vpack.c.b16 %v224, %v208
    %v273 = vpack.c.b16 %v225, %v209
    %v274 = vpack.c.b16 %v226, %v210
    %v275 = vpack.c.b16 %v227, %v211
    %v276 = vpack.c.b16 %v228, %v212
    %v277 = vpack.c.b16 %v229, %v213
    %v278 = vpack.c.b16 %v246, %v230
    %v279 = vpack.c.b16 %v247, %v231
    %v280 = vpack.c.b16 %v248, %v232
    %v281 = vpack.c.b16 %v249, %v233
    %v282 = vpack.c.b16 %v250, %v234
    %v283 = vpack.c.b16 %v251, %v235
    %v284 = vpack.c.b16 %v252, %v236
    %v285 = vpack.c.b16 %v253, %v237
    %v286 = vpack.c.b16 %v254, %v238
    %v287 = vpack.c.b16 %v255, %v239
    %v288 = vpack.c.b16 %v256, %v240
    %v289 = vpack.c.b16 %v257, %v241
    %v290 = vpack.c.b16 %v258, %v242
    %v291 = vpack.c.b16 %v259, %v243
    %v292 = vpack.c.b16 %v260, %v244
    %v293 = vpack.c.b16 %v261, %v245
    %vm326 = vcmask 261120
    %v328 = vsel %vm326, %v49, 0
    %330 = vmatprep.subr.bf16.mxu0 %v263
    %331 = vmatpush1.bf16.msra.mxu0 %v262
    %332 = vmatprep.subr.bf16.mxu0 %v279
    %333 = vmatpush1.bf16.msra.mxu0 %v278
    %334 = vmatprep.subr.bf16.mxu0 0
    %335 = vmatpush1.bf16.msra.mxu0 0
    %336 = vmatprep.subr.bf16.mxu0 0
    %337 = vmatpush1.bf16.msra.mxu0 0
    %338 = vmatprep.subr.bf16.mxu0 0
    %339 = vmatpush1.bf16.msra.mxu0 0
    %340 = vmatprep.subr.bf16.mxu0 0
    %341 = vmatpush1.bf16.msra.mxu0 0
    %342 = vmatprep.subr.bf16.mxu0 0
    %343 = vmatpush1.bf16.msra.mxu0 0
    %344 = vmatprep.subr.bf16.mxu0 0
    %345 = vmatpush1.bf16.msra.mxu0 0
    %346 = vmatprep.subr.bf16.mxu0 0
    %347 = vmatpush1.bf16.msra.mxu0 0
    %348 = vmatprep.subr.bf16.mxu0 0
    %349 = vmatpush1.bf16.msra.mxu0 0
    %350 = vmatprep.subr.bf16.mxu0 0
    %351 = vmatpush1.bf16.msra.mxu0 0
    %352 = vmatprep.subr.bf16.mxu0 0
    %353 = vmatpush1.bf16.msra.mxu0 0
    %354 = vmatprep.subr.bf16.mxu0 0
    %355 = vmatpush1.bf16.msra.mxu0 0
    %356 = vmatprep.subr.bf16.mxu0 0
    %357 = vmatpush1.bf16.msra.mxu0 0
    %358 = vmatprep.subr.bf16.mxu0 0
    %359 = vmatpush1.bf16.msra.mxu0 0
    %360 = vmatprep.subr.bf16.mxu0 0
    %361 = vmatpush1.bf16.msra.mxu0 0
    %362 = vmatprep.mubr.bf16.mxu0 0
    %363 = vmatmul.mubr.bf16.gmra.mrb[0].mxu0 %v328
    %v364 = vpop.f32.mrb[0].mxu0
    %v365 = vadd.f32 %v89, %v364
    %v366 = vpop.f32.mrb[0].mxu0
    %v367 = vadd.f32 %v93, %v366
    %v368 = vpop.f32.mrb[0].mxu0
    %v369 = vpop.f32.mrb[0].mxu0
    %370 = vdwg.mxu0
    %371 = vmatprep.subr.bf16.mxu0 %v265
    %372 = vmatpush1.bf16.msra.mxu0 %v264
    %373 = vmatprep.subr.bf16.mxu0 %v281
    %374 = vmatpush1.bf16.msra.mxu0 %v280
    %375 = vmatprep.subr.bf16.mxu0 0
    %376 = vmatpush1.bf16.msra.mxu0 0
    %377 = vmatprep.subr.bf16.mxu0 0
    %378 = vmatpush1.bf16.msra.mxu0 0
    %379 = vmatprep.subr.bf16.mxu0 0
    %380 = vmatpush1.bf16.msra.mxu0 0
    %381 = vmatprep.subr.bf16.mxu0 0
    %382 = vmatpush1.bf16.msra.mxu0 0
    %383 = vmatprep.subr.bf16.mxu0 0
    %384 = vmatpush1.bf16.msra.mxu0 0
    %385 = vmatprep.subr.bf16.mxu0 0
    %386 = vmatpush1.bf16.msra.mxu0 0
    %387 = vmatprep.subr.bf16.mxu0 0
    %388 = vmatpush1.bf16.msra.mxu0 0
    %389 = vmatprep.subr.bf16.mxu0 0
    %390 = vmatpush1.bf16.msra.mxu0 0
    %391 = vmatprep.subr.bf16.mxu0 0
    %392 = vmatpush1.bf16.msra.mxu0 0
    %393 = vmatprep.subr.bf16.mxu0 0
    %394 = vmatpush1.bf16.msra.mxu0 0
    %395 = vmatprep.subr.bf16.mxu0 0
    %396 = vmatpush1.bf16.msra.mxu0 0
    %397 = vmatprep.subr.bf16.mxu0 0
    %398 = vmatpush1.bf16.msra.mxu0 0
    %399 = vmatprep.subr.bf16.mxu0 0
    %400 = vmatpush1.bf16.msra.mxu0 0
    %401 = vmatprep.subr.bf16.mxu0 0
    %402 = vmatpush1.bf16.msra.mxu0 0
    %403 = vmatprep.mubr.bf16.mxu0 0
    %404 = vmatmul.mubr.bf16.gmra.mrb[0].mxu0 %v328
    %v405 = vpop.f32.mrb[0].mxu0
    %v406 = vadd.f32 %v97, %v405
    %v407 = vpop.f32.mrb[0].mxu0
    %v408 = vadd.f32 %v101, %v407
    %v409 = vpop.f32.mrb[0].mxu0
    %v410 = vpop.f32.mrb[0].mxu0
    %411 = vdwg.mxu0
    %412 = vmatprep.subr.bf16.mxu0 %v267
    %413 = vmatpush1.bf16.msra.mxu0 %v266
    %414 = vmatprep.subr.bf16.mxu0 %v283
    %415 = vmatpush1.bf16.msra.mxu0 %v282
    %416 = vmatprep.subr.bf16.mxu0 0
    %417 = vmatpush1.bf16.msra.mxu0 0
    %418 = vmatprep.subr.bf16.mxu0 0
    %419 = vmatpush1.bf16.msra.mxu0 0
    %420 = vmatprep.subr.bf16.mxu0 0
    %421 = vmatpush1.bf16.msra.mxu0 0
    %422 = vmatprep.subr.bf16.mxu0 0
    %423 = vmatpush1.bf16.msra.mxu0 0
    %424 = vmatprep.subr.bf16.mxu0 0
    %425 = vmatpush1.bf16.msra.mxu0 0
    %426 = vmatprep.subr.bf16.mxu0 0
    %427 = vmatpush1.bf16.msra.mxu0 0
    %428 = vmatprep.subr.bf16.mxu0 0
    %429 = vmatpush1.bf16.msra.mxu0 0
    %430 = vmatprep.subr.bf16.mxu0 0
    %431 = vmatpush1.bf16.msra.mxu0 0
    %432 = vmatprep.subr.bf16.mxu0 0
    %433 = vmatpush1.bf16.msra.mxu0 0
    %434 = vmatprep.subr.bf16.mxu0 0
    %435 = vmatpush1.bf16.msra.mxu0 0
    %436 = vmatprep.subr.bf16.mxu0 0
    %437 = vmatpush1.bf16.msra.mxu0 0
    %438 = vmatprep.subr.bf16.mxu0 0
    %439 = vmatpush1.bf16.msra.mxu0 0
    %440 = vmatprep.subr.bf16.mxu0 0
    %441 = vmatpush1.bf16.msra.mxu0 0
    %442 = vmatprep.subr.bf16.mxu0 0
    %443 = vmatpush1.bf16.msra.mxu0 0
    %444 = vmatprep.mubr.bf16.mxu0 0
    %445 = vmatmul.mubr.bf16.gmra.mrb[0].mxu0 %v328
    %v446 = vpop.f32.mrb[0].mxu0
    %v447 = vadd.f32 %v105, %v446
    %v448 = vpop.f32.mrb[0].mxu0
    %v449 = vadd.f32 %v109, %v448
    %v450 = vpop.f32.mrb[0].mxu0
    %v451 = vpop.f32.mrb[0].mxu0
    %452 = vdwg.mxu0
    %453 = vmatprep.subr.bf16.mxu0 %v269
    %454 = vmatpush1.bf16.msra.mxu0 %v268
    %455 = vmatprep.subr.bf16.mxu0 %v285
    %456 = vmatpush1.bf16.msra.mxu0 %v284
    %457 = vmatprep.subr.bf16.mxu0 0
    %458 = vmatpush1.bf16.msra.mxu0 0
    %459 = vmatprep.subr.bf16.mxu0 0
    %460 = vmatpush1.bf16.msra.mxu0 0
    %461 = vmatprep.subr.bf16.mxu0 0
    %462 = vmatpush1.bf16.msra.mxu0 0
    %463 = vmatprep.subr.bf16.mxu0 0
    %464 = vmatpush1.bf16.msra.mxu0 0
    %465 = vmatprep.subr.bf16.mxu0 0
    %466 = vmatpush1.bf16.msra.mxu0 0
    %467 = vmatprep.subr.bf16.mxu0 0
    %468 = vmatpush1.bf16.msra.mxu0 0
    %469 = vmatprep.subr.bf16.mxu0 0
    %470 = vmatpush1.bf16.msra.mxu0 0
    %471 = vmatprep.subr.bf16.mxu0 0
    %472 = vmatpush1.bf16.msra.mxu0 0
    %473 = vmatprep.subr.bf16.mxu0 0
    %474 = vmatpush1.bf16.msra.mxu0 0
    %475 = vmatprep.subr.bf16.mxu0 0
    %476 = vmatpush1.bf16.msra.mxu0 0
    %477 = vmatprep.subr.bf16.mxu0 0
    %478 = vmatpush1.bf16.msra.mxu0 0
    %479 = vmatprep.subr.bf16.mxu0 0
    %480 = vmatpush1.bf16.msra.mxu0 0
    %481 = vmatprep.subr.bf16.mxu0 0
    %482 = vmatpush1.bf16.msra.mxu0 0
    %483 = vmatprep.subr.bf16.mxu0 0
    %484 = vmatpush1.bf16.msra.mxu0 0
    %485 = vmatprep.mubr.bf16.mxu0 0
    %486 = vmatmul.mubr.bf16.gmra.mrb[0].mxu0 %v328
    %v487 = vpop.f32.mrb[0].mxu0
    %v488 = vadd.f32 %v113, %v487
    %v489 = vpop.f32.mrb[0].mxu0
    %v490 = vadd.f32 %v117, %v489
    %v491 = vpop.f32.mrb[0].mxu0
    %v492 = vpop.f32.mrb[0].mxu0
    %493 = vdwg.mxu0
    %494 = vmatprep.subr.bf16.mxu0 %v271
    %495 = vmatpush1.bf16.msra.mxu0 %v270
    %496 = vmatprep.subr.bf16.mxu0 %v287
    %497 = vmatpush1.bf16.msra.mxu0 %v286
    %498 = vmatprep.subr.bf16.mxu0 0
    %499 = vmatpush1.bf16.msra.mxu0 0
    %500 = vmatprep.subr.bf16.mxu0 0
    %501 = vmatpush1.bf16.msra.mxu0 0
    %502 = vmatprep.subr.bf16.mxu0 0
    %503 = vmatpush1.bf16.msra.mxu0 0
    %504 = vmatprep.subr.bf16.mxu0 0
    %505 = vmatpush1.bf16.msra.mxu0 0
    %506 = vmatprep.subr.bf16.mxu0 0
    %507 = vmatpush1.bf16.msra.mxu0 0
    %508 = vmatprep.subr.bf16.mxu0 0
    %509 = vmatpush1.bf16.msra.mxu0 0
    %510 = vmatprep.subr.bf16.mxu0 0
    %511 = vmatpush1.bf16.msra.mxu0 0
    %512 = vmatprep.subr.bf16.mxu0 0
    %513 = vmatpush1.bf16.msra.mxu0 0
    %514 = vmatprep.subr.bf16.mxu0 0
    %515 = vmatpush1.bf16.msra.mxu0 0
    %516 = vmatprep.subr.bf16.mxu0 0
    %517 = vmatpush1.bf16.msra.mxu0 0
    %518 = vmatprep.subr.bf16.mxu0 0
    %519 = vmatpush1.bf16.msra.mxu0 0
    %520 = vmatprep.subr.bf16.mxu0 0
    %521 = vmatpush1.bf16.msra.mxu0 0
    %522 = vmatprep.subr.bf16.mxu0 0
    %523 = vmatpush1.bf16.msra.mxu0 0
    %524 = vmatprep.subr.bf16.mxu0 0
    %525 = vmatpush1.bf16.msra.mxu0 0
    %526 = vmatprep.mubr.bf16.mxu0 0
    %527 = vmatmul.mubr.bf16.gmra.mrb[0].mxu0 %v328
    %v528 = vpop.f32.mrb[0].mxu0
    %v529 = vadd.f32 %v121, %v528
    %v530 = vpop.f32.mrb[0].mxu0
    %v531 = vadd.f32 %v125, %v530
    %v532 = vpop.f32.mrb[0].mxu0
    %v533 = vpop.f32.mrb[0].mxu0
    %534 = vdwg.mxu0
    %535 = vmatprep.subr.bf16.mxu0 %v273
    %536 = vmatpush1.bf16.msra.mxu0 %v272
    %537 = vmatprep.subr.bf16.mxu0 %v289
    %538 = vmatpush1.bf16.msra.mxu0 %v288
    %539 = vmatprep.subr.bf16.mxu0 0
    %540 = vmatpush1.bf16.msra.mxu0 0
    %541 = vmatprep.subr.bf16.mxu0 0
    %542 = vmatpush1.bf16.msra.mxu0 0
    %543 = vmatprep.subr.bf16.mxu0 0
    %544 = vmatpush1.bf16.msra.mxu0 0
    %545 = vmatprep.subr.bf16.mxu0 0
    %546 = vmatpush1.bf16.msra.mxu0 0
    %547 = vmatprep.subr.bf16.mxu0 0
    %548 = vmatpush1.bf16.msra.mxu0 0
    %549 = vmatprep.subr.bf16.mxu0 0
    %550 = vmatpush1.bf16.msra.mxu0 0
    %551 = vmatprep.subr.bf16.mxu0 0
    %552 = vmatpush1.bf16.msra.mxu0 0
    %553 = vmatprep.subr.bf16.mxu0 0
    %554 = vmatpush1.bf16.msra.mxu0 0
    %555 = vmatprep.subr.bf16.mxu0 0
    %556 = vmatpush1.bf16.msra.mxu0 0
    %557 = vmatprep.subr.bf16.mxu0 0
    %558 = vmatpush1.bf16.msra.mxu0 0
    %559 = vmatprep.subr.bf16.mxu0 0
    %560 = vmatpush1.bf16.msra.mxu0 0
    %561 = vmatprep.subr.bf16.mxu0 0
    %562 = vmatpush1.bf16.msra.mxu0 0
    %563 = vmatprep.subr.bf16.mxu0 0
    %564 = vmatpush1.bf16.msra.mxu0 0
    %565 = vmatprep.subr.bf16.mxu0 0
    %566 = vmatpush1.bf16.msra.mxu0 0
    %567 = vmatprep.mubr.bf16.mxu0 0
    %568 = vmatmul.mubr.bf16.gmra.mrb[0].mxu0 %v328
    %v569 = vpop.f32.mrb[0].mxu0
    %v570 = vadd.f32 %v129, %v569
    %v571 = vpop.f32.mrb[0].mxu0
    %v572 = vadd.f32 %v133, %v571
    %v573 = vpop.f32.mrb[0].mxu0
    %v574 = vpop.f32.mrb[0].mxu0
    %575 = vdwg.mxu0
    %576 = vmatprep.subr.bf16.mxu0 %v275
    %577 = vmatpush1.bf16.msra.mxu0 %v274
    %578 = vmatprep.subr.bf16.mxu0 %v291
    %579 = vmatpush1.bf16.msra.mxu0 %v290
    %580 = vmatprep.subr.bf16.mxu0 0
    %581 = vmatpush1.bf16.msra.mxu0 0
    %582 = vmatprep.subr.bf16.mxu0 0
    %583 = vmatpush1.bf16.msra.mxu0 0
    %584 = vmatprep.subr.bf16.mxu0 0
    %585 = vmatpush1.bf16.msra.mxu0 0
    %586 = vmatprep.subr.bf16.mxu0 0
    %587 = vmatpush1.bf16.msra.mxu0 0
    %588 = vmatprep.subr.bf16.mxu0 0
    %589 = vmatpush1.bf16.msra.mxu0 0
    %590 = vmatprep.subr.bf16.mxu0 0
    %591 = vmatpush1.bf16.msra.mxu0 0
    %592 = vmatprep.subr.bf16.mxu0 0
    %593 = vmatpush1.bf16.msra.mxu0 0
    %594 = vmatprep.subr.bf16.mxu0 0
    %595 = vmatpush1.bf16.msra.mxu0 0
    %596 = vmatprep.subr.bf16.mxu0 0
    %597 = vmatpush1.bf16.msra.mxu0 0
    %598 = vmatprep.subr.bf16.mxu0 0
    %599 = vmatpush1.bf16.msra.mxu0 0
    %600 = vmatprep.subr.bf16.mxu0 0
    %601 = vmatpush1.bf16.msra.mxu0 0
    %602 = vmatprep.subr.bf16.mxu0 0
    %603 = vmatpush1.bf16.msra.mxu0 0
    %604 = vmatprep.subr.bf16.mxu0 0
    %605 = vmatpush1.bf16.msra.mxu0 0
    %606 = vmatprep.subr.bf16.mxu0 0
    %607 = vmatpush1.bf16.msra.mxu0 0
    %608 = vmatprep.mubr.bf16.mxu0 0
    %609 = vmatmul.mubr.bf16.gmra.mrb[0].mxu0 %v328
    %v610 = vpop.f32.mrb[0].mxu0
    %v611 = vadd.f32 %v137, %v610
    %v612 = vpop.f32.mrb[0].mxu0
    %v613 = vadd.f32 %v141, %v612
    %v614 = vpop.f32.mrb[0].mxu0
    %v615 = vpop.f32.mrb[0].mxu0
    %616 = vdwg.mxu0
    %617 = vmatprep.subr.bf16.mxu0 %v277
    %618 = vmatpush1.bf16.msra.mxu0 %v276
    %619 = vmatprep.subr.bf16.mxu0 %v293
    %620 = vmatpush1.bf16.msra.mxu0 %v292
    %621 = vmatprep.subr.bf16.mxu0 0
    %622 = vmatpush1.bf16.msra.mxu0 0
    %623 = vmatprep.subr.bf16.mxu0 0
    %624 = vmatpush1.bf16.msra.mxu0 0
    %625 = vmatprep.subr.bf16.mxu0 0
    %626 = vmatpush1.bf16.msra.mxu0 0
    %627 = vmatprep.subr.bf16.mxu0 0
    %628 = vmatpush1.bf16.msra.mxu0 0
    %629 = vmatprep.subr.bf16.mxu0 0
    %630 = vmatpush1.bf16.msra.mxu0 0
    %631 = vmatprep.subr.bf16.mxu0 0
    %632 = vmatpush1.bf16.msra.mxu0 0
    %633 = vmatprep.subr.bf16.mxu0 0
    %634 = vmatpush1.bf16.msra.mxu0 0
    %635 = vmatprep.subr.bf16.mxu0 0
    %636 = vmatpush1.bf16.msra.mxu0 0
    %637 = vmatprep.subr.bf16.mxu0 0
    %638 = vmatpush1.bf16.msra.mxu0 0
    %639 = vmatprep.subr.bf16.mxu0 0
    %640 = vmatpush1.bf16.msra.mxu0 0
    %641 = vmatprep.subr.bf16.mxu0 0
    %642 = vmatpush1.bf16.msra.mxu0 0
    %643 = vmatprep.subr.bf16.mxu0 0
    %644 = vmatpush1.bf16.msra.mxu0 0
    %645 = vmatprep.subr.bf16.mxu0 0
    %646 = vmatpush1.bf16.msra.mxu0 0
    %647 = vmatprep.subr.bf16.mxu0 0
    %648 = vmatpush1.bf16.msra.mxu0 0
    %649 = vmatprep.mubr.bf16.mxu0 0
    %650 = vmatmul.mubr.bf16.gmra.mrb[0].mxu0 %v328
    %v651 = vpop.f32.mrb[0].mxu0
    %v652 = vadd.f32 %v145, %v651
    %v653 = vpop.f32.mrb[0].mxu0
    %v654 = vadd.f32 %v149, %v653
    %v655 = vpop.f32.mrb[0].mxu0
    %v656 = vpop.f32.mrb[0].mxu0
    %657 = vdwg.mxu0
    %s658 = sld [smem:[#allocation5]]
    %vm659 = vcmp.gt.f32.partialorder %v365, 0.0
    %vm660 = vcmp.gt.f32.partialorder %v367, 0.0
    %vm661 = vcmp.gt.f32.partialorder %v406, 0.0
    %vm662 = vcmp.gt.f32.partialorder %v408, 0.0
    %vm663 = vcmp.gt.f32.partialorder %v447, 0.0
    %vm664 = vcmp.gt.f32.partialorder %v449, 0.0
    %vm665 = vcmp.gt.f32.partialorder %v488, 0.0
    %vm666 = vcmp.gt.f32.partialorder %v490, 0.0
    %vm667 = vcmp.gt.f32.partialorder %v529, 0.0
    %vm668 = vcmp.gt.f32.partialorder %v531, 0.0
    %vm669 = vcmp.gt.f32.partialorder %v570, 0.0
    %vm670 = vcmp.gt.f32.partialorder %v572, 0.0
    %vm671 = vcmp.gt.f32.partialorder %v611, 0.0
    %vm672 = vcmp.gt.f32.partialorder %v613, 0.0
    %vm673 = vcmp.gt.f32.partialorder %v652, 0.0
    %vm674 = vcmp.gt.f32.partialorder %v654, 0.0
    %v675 = vstv %s658
    %v676 = vmul.f32 %v675, %v365
    %v677 = vmul.f32 %v675, %v367
    %v678 = vmul.f32 %v675, %v406
    %v679 = vmul.f32 %v675, %v408
    %v680 = vmul.f32 %v675, %v447
    %v681 = vmul.f32 %v675, %v449
    %v682 = vmul.f32 %v675, %v488
    %v683 = vmul.f32 %v675, %v490
    %v684 = vmul.f32 %v675, %v529
    %v685 = vmul.f32 %v675, %v531
    %v686 = vmul.f32 %v675, %v570
    %v687 = vmul.f32 %v675, %v572
    %v688 = vmul.f32 %v675, %v611
    %v689 = vmul.f32 %v675, %v613
    %v690 = vmul.f32 %v675, %v652
    %v691 = vmul.f32 %v675, %v654
    %v692 = vsel %vm659, %v365, %v676
    %v693 = vsel %vm660, %v367, %v677
    %v694 = vsel %vm661, %v406, %v678
    %v695 = vsel %vm662, %v408, %v679
    %v696 = vsel %vm663, %v447, %v680
    %v697 = vsel %vm664, %v449, %v681
    %v698 = vsel %vm665, %v488, %v682
    %v699 = vsel %vm666, %v490, %v683
    %v700 = vsel %vm667, %v529, %v684
    %v701 = vsel %vm668, %v531, %v685
    %v702 = vsel %vm669, %v570, %v686
    %v703 = vsel %vm670, %v572, %v687
    %v704 = vsel %vm671, %v611, %v688
    %v705 = vsel %vm672, %v613, %v689
    %v706 = vsel %vm673, %v652, %v690
    %v707 = vsel %vm674, %v654, %v691
    %708 = vst [vmem:[#allocation2] sm:$0xff] %v694
    %709 = vst [vmem:[#allocation2 + $0x8] sm:$0xff] %v695
    %710 = vst [vmem:[#allocation2 + $0x10] sm:$0xff] %v692
    %711 = vst [vmem:[#allocation2 + $0x18] sm:$0xff] %v693
    %712 = vst [vmem:[#allocation2 + $0x20] sm:$0xff] %v694
    %713 = vst [vmem:[#allocation2 + $0x28] sm:$0xff] %v695
    %714 = vst [vmem:[#allocation2 + $0x30] sm:$0xff] %v692
    %715 = vst [vmem:[#allocation2 + $0x38] sm:$0xff] %v693
    %716 = vst [vmem:[#allocation2 + $0x40] sm:$0xff] %v694
    %717 = vst [vmem:[#allocation2 + $0x48] sm:$0xff] %v695
    %718 = vst [vmem:[#allocation2 + $0x50] sm:$0xff] %v696
    %719 = vst [vmem:[#allocation2 + $0x58] sm:$0xff] %v697
    %720 = vst [vmem:[#allocation2 + $0x60] sm:$0xff] %v694
    %721 = vst [vmem:[#allocation2 + $0x68] sm:$0xff] %v695
    %722 = vst [vmem:[#allocation2 + $0x70] sm:$0xff] %v696
    %723 = vst [vmem:[#allocation2 + $0x78] sm:$0xff] %v697
    %724 = vst [vmem:[#allocation2 + $0x80] sm:$0xff] %v698
    %725 = vst [vmem:[#allocation2 + $0x88] sm:$0xff] %v699
    %726 = vst [vmem:[#allocation2 + $0x90] sm:$0xff] %v696
    %727 = vst [vmem:[#allocation2 + $0x98] sm:$0xff] %v697
    %728 = vst [vmem:[#allocation2 + $0xa0] sm:$0xff] %v698
    %729 = vst [vmem:[#allocation2 + $0xa8] sm:$0xff] %v699
    %730 = vst [vmem:[#allocation2 + $0xb0] sm:$0xff] %v700
    %731 = vst [vmem:[#allocation2 + $0xb8] sm:$0xff] %v701
    %732 = vst [vmem:[#allocation2 + $0xc0] sm:$0xff] %v698
    %733 = vst [vmem:[#allocation2 + $0xc8] sm:$0xff] %v699
    %734 = vst [vmem:[#allocation2 + $0xd0] sm:$0xff] %v700
    %735 = vst [vmem:[#allocation2 + $0xd8] sm:$0xff] %v701
    %736 = vst [vmem:[#allocation2 + $0xe0] sm:$0xff] %v702
    %737 = vst [vmem:[#allocation2 + $0xe8] sm:$0xff] %v703
    %738 = vst [vmem:[#allocation2 + $0xf0] sm:$0xff] %v700
    %739 = vst [vmem:[#allocation2 + $0xf8] sm:$0xff] %v701
    %740 = vst [vmem:[#allocation2 + $0x100] sm:$0xff] %v702
    %741 = vst [vmem:[#allocation2 + $0x108] sm:$0xff] %v703
    %742 = vst [vmem:[#allocation2 + $0x110] sm:$0xff] %v704
    %743 = vst [vmem:[#allocation2 + $0x118] sm:$0xff] %v705
    %744 = vst [vmem:[#allocation2 + $0x120] sm:$0xff] %v702
    %745 = vst [vmem:[#allocation2 + $0x128] sm:$0xff] %v703
    %746 = vst [vmem:[#allocation2 + $0x130] sm:$0xff] %v704
    %747 = vst [vmem:[#allocation2 + $0x138] sm:$0xff] %v705
    %748 = vst [vmem:[#allocation2 + $0x140] sm:$0xff] %v706
    %749 = vst [vmem:[#allocation2 + $0x148] sm:$0xff] %v707
    %750 = vst [vmem:[#allocation2 + $0x150] sm:$0xff] %v704
    %751 = vst [vmem:[#allocation2 + $0x158] sm:$0xff] %v705
    %752 = vst [vmem:[#allocation2 + $0x160] sm:$0xff] %v706
    %753 = vst [vmem:[#allocation2 + $0x168] sm:$0xff] %v707
    %754 = vst [vmem:[#allocation2 + $0x170] sm:$0xff] %v704
    %755 = vst [vmem:[#allocation2 + $0x178] sm:$0xff] %v705
    %s756 = smul.u32 4, 96
    %s757 = smul.u32 %s756, 1
    %s758 = sshll.u32 %s757, 4
    %759 = dma.done [#allocation4], %s758
    %v760 = vld [vmem:[#allocation2] sm:$0xff]
    %v761 = vld [vmem:[#allocation2 + $0x8] sm:$0xff]
    %v762 = vld [vmem:[#allocation2 + $0x10] sm:$0xff]
    %v763 = vld [vmem:[#allocation2 + $0x18] sm:$0xff]
    %v764 = vld [vmem:[#allocation2 + $0x20] sm:$0xff]
    %v765 = vld [vmem:[#allocation2 + $0x28] sm:$0xff]
    %v766 = vld [vmem:[#allocation2 + $0x30] sm:$0xff]
    %v767 = vld [vmem:[#allocation2 + $0x38] sm:$0xff]
    %v768 = vld [vmem:[#allocation2 + $0x40] sm:$0xff]
    %v769 = vld [vmem:[#allocation2 + $0x48] sm:$0xff]
    %v770 = vld [vmem:[#allocation2 + $0x50] sm:$0xff]
    %v771 = vld [vmem:[#allocation2 + $0x58] sm:$0xff]
    %v772 = vld [vmem:[#allocation2 + $0x60] sm:$0xff]
    %v773 = vld [vmem:[#allocation2 + $0x68] sm:$0xff]
    %v774 = vld [vmem:[#allocation2 + $0x70] sm:$0xff]
    %v775 = vld [vmem:[#allocation2 + $0x78] sm:$0xff]
    %v776 = vld [vmem:[#allocation2 + $0x80] sm:$0xff]
    %v777 = vld [vmem:[#allocation2 + $0x88] sm:$0xff]
    %v778 = vld [vmem:[#allocation2 + $0x90] sm:$0xff]
    %v779 = vld [vmem:[#allocation2 + $0x98] sm:$0xff]
    %v780 = vld [vmem:[#allocation2 + $0xa0] sm:$0xff]
    %v781 = vld [vmem:[#allocation2 + $0xa8] sm:$0xff]
    %v782 = vld [vmem:[#allocation2 + $0xb0] sm:$0xff]
    %v783 = vld [vmem:[#allocation2 + $0xb8] sm:$0xff]
    %v784 = vld [vmem:[#allocation2 + $0xc0] sm:$0xff]
    %v785 = vld [vmem:[#allocation2 + $0xc8] sm:$0xff]
    %v786 = vld [vmem:[#allocation2 + $0xd0] sm:$0xff]
    %v787 = vld [vmem:[#allocation2 + $0xd8] sm:$0xff]
    %v788 = vld [vmem:[#allocation2 + $0xe0] sm:$0xff]
    %v789 = vld [vmem:[#allocation2 + $0xe8] sm:$0xff]
    %v790 = vld [vmem:[#allocation2 + $0xf0] sm:$0xff]
    %v791 = vld [vmem:[#allocation2 + $0xf8] sm:$0xff]
    %v792 = vld [vmem:[#allocation2 + $0x100] sm:$0xff]
    %v793 = vld [vmem:[#allocation2 + $0x108] sm:$0xff]
    %v794 = vld [vmem:[#allocation2 + $0x110] sm:$0xff]
    %v795 = vld [vmem:[#allocation2 + $0x118] sm:$0xff]
    %v796 = vld [vmem:[#allocation2 + $0x120] sm:$0xff]
    %v797 = vld [vmem:[#allocation2 + $0x128] sm:$0xff]
    %v798 = vld [vmem:[#allocation2 + $0x130] sm:$0xff]
    %v799 = vld [vmem:[#allocation2 + $0x138] sm:$0xff]
    %v800 = vld [vmem:[#allocation2 + $0x140] sm:$0xff]
    %v801 = vld [vmem:[#allocation2 + $0x148] sm:$0xff]
    %v802 = vld [vmem:[#allocation2 + $0x150] sm:$0xff]
    %v803 = vld [vmem:[#allocation2 + $0x158] sm:$0xff]
    %v804 = vld [vmem:[#allocation2 + $0x160] sm:$0xff]
    %v805 = vld [vmem:[#allocation2 + $0x168] sm:$0xff]
    %v806 = vld [vmem:[#allocation2 + $0x170] sm:$0xff]
    %v807 = vld [vmem:[#allocation2 + $0x178] sm:$0xff]
    %v808 = vpack.c.bf16 %v766, %v760
    %v809 = vpack.c.bf16 %v767, %v761
    %v810 = vpack.c.bf16 %v768, %v762
    %v811 = vpack.c.bf16 %v769, %v763
    %v812 = vpack.c.bf16 %v770, %v764
    %v813 = vpack.c.bf16 %v771, %v765
    %v814 = vpack.c.bf16 %v778, %v772
    %v815 = vpack.c.bf16 %v779, %v773
    %v816 = vpack.c.bf16 %v780, %v774
    %v817 = vpack.c.bf16 %v781, %v775
    %v818 = vpack.c.bf16 %v782, %v776
    %v819 = vpack.c.bf16 %v783, %v777
    %v820 = vpack.c.bf16 %v790, %v784
    %v821 = vpack.c.bf16 %v791, %v785
    %v822 = vpack.c.bf16 %v792, %v786
    %v823 = vpack.c.bf16 %v793, %v787
    %v824 = vpack.c.bf16 %v794, %v788
    %v825 = vpack.c.bf16 %v795, %v789
    %v826 = vpack.c.bf16 %v802, %v796
    %v827 = vpack.c.bf16 %v803, %v797
    %v828 = vpack.c.bf16 %v804, %v798
    %v829 = vpack.c.bf16 %v805, %v799
    %v830 = vpack.c.bf16 %v806, %v800
    %v831 = vpack.c.bf16 %v807, %v801
    %v832 = vld [vmem:[#allocation3] sm:$0xff]
    %v833 = vld [vmem:[#allocation3 + $0x8] sm:$0xff]
    %v834 = vld [vmem:[#allocation3 + $0x10] sm:$0xff]
    %v835 = vld [vmem:[#allocation3 + $0x18] sm:$0xff]
    %v836 = vld [vmem:[#allocation3 + $0x20] sm:$0xff]
    %v837 = vld [vmem:[#allocation3 + $0x28] sm:$0xff]
    %v838 = vld [vmem:[#allocation3 + $0x30] sm:$0xff]
    %v839 = vld [vmem:[#allocation3 + $0x38] sm:$0xff]
    %v840 = vld [vmem:[#allocation3 + $0x40] sm:$0xff]
    %v841 = vld [vmem:[#allocation3 + $0x48] sm:$0xff]
    %v842 = vld [vmem:[#allocation3 + $0x50] sm:$0xff]
    %v843 = vld [vmem:[#allocation3 + $0x58] sm:$0xff]
    %v844 = vld [vmem:[#allocation3 + $0x60] sm:$0xff]
    %v845 = vld [vmem:[#allocation3 + $0x68] sm:$0xff]
    %v846 = vld [vmem:[#allocation3 + $0x70] sm:$0xff]
    %v847 = vld [vmem:[#allocation3 + $0x78] sm:$0xff]
    %v848 = vld [vmem:[#allocation3 + $0x80] sm:$0xff]
    %v849 = vld [vmem:[#allocation3 + $0x88] sm:$0xff]
    %v850 = vld [vmem:[#allocation3 + $0x90] sm:$0xff]
    %v851 = vld [vmem:[#allocation3 + $0x98] sm:$0xff]
    %v852 = vld [vmem:[#allocation3 + $0xa0] sm:$0xff]
    %v853 = vld [vmem:[#allocation3 + $0xa8] sm:$0xff]
    %v854 = vld [vmem:[#allocation3 + $0xb0] sm:$0xff]
    %v855 = vld [vmem:[#allocation3 + $0xb8] sm:$0xff]
    %v856 = vld [vmem:[#allocation3 + $0xc0] sm:$0xff]
    %v857 = vld [vmem:[#allocation3 + $0xc8] sm:$0xff]
    %v858 = vld [vmem:[#allocation3 + $0xd0] sm:$0xff]
    %v859 = vld [vmem:[#allocation3 + $0xd8] sm:$0xff]
    %v860 = vld [vmem:[#allocation3 + $0xe0] sm:$0xff]
    %v861 = vld [vmem:[#allocation3 + $0xe8] sm:$0xff]
    %v862 = vld [vmem:[#allocation3 + $0xf0] sm:$0xff]
    %v863 = vld [vmem:[#allocation3 + $0xf8] sm:$0xff]
    %v864 = vld [vmem:[#allocation3 + $0x100] sm:$0xff]
    %v865 = vld [vmem:[#allocation3 + $0x108] sm:$0xff]
    %v866 = vld [vmem:[#allocation3 + $0x110] sm:$0xff]
    %v867 = vld [vmem:[#allocation3 + $0x118] sm:$0xff]
    %v868 = vld [vmem:[#allocation3 + $0x120] sm:$0xff]
    %v869 = vld [vmem:[#allocation3 + $0x128] sm:$0xff]
    %v870 = vld [vmem:[#allocation3 + $0x130] sm:$0xff]
    %v871 = vld [vmem:[#allocation3 + $0x138] sm:$0xff]
    %v872 = vld [vmem:[#allocation3 + $0x140] sm:$0xff]
    %v873 = vld [vmem:[#allocation3 + $0x148] sm:$0xff]
    %v874 = vld [vmem:[#allocation3 + $0x150] sm:$0xff]
    %v875 = vld [vmem:[#allocation3 + $0x158] sm:$0xff]
    %v876 = vld [vmem:[#allocation3 + $0x160] sm:$0xff]
    %v877 = vld [vmem:[#allocation3 + $0x168] sm:$0xff]
    %v878 = vld [vmem:[#allocation3 + $0x170] sm:$0xff]
    %v879 = vld [vmem:[#allocation3 + $0x178] sm:$0xff]
    %v880 = vld [vmem:[%s3] sm:$0x1]
    %v882 = vlaneseq
    %v883 = vshrl.u32 %v882, 7
    %v884 = vsub.s32 0, %v883
    %v885 = vrot.slane %v880, %v884
    %887 = vmatprep.subr.bf16.mxu0 0
    %888 = vmatpush1.bf16.msra.mxu0 %v832
    %889 = vmatprep.subr.bf16.mxu0 0
    %890 = vmatpush1.bf16.msra.mxu0 %v833
    %891 = vmatprep.subr.bf16.mxu0 0
    %892 = vmatpush1.bf16.msra.mxu0 %v834
    %893 = vmatprep.subr.bf16.mxu0 0
    %894 = vmatpush1.bf16.msra.mxu0 %v835
    %895 = vmatprep.subr.bf16.mxu0 0
    %896 = vmatpush1.bf16.msra.mxu0 %v836
    %897 = vmatprep.subr.bf16.mxu0 0
    %898 = vmatpush1.bf16.msra.mxu0 %v837
    %899 = vmatprep.subr.bf16.mxu0 0
    %900 = vmatpush1.bf16.msra.mxu0 %v838
    %901 = vmatprep.subr.bf16.mxu0 0
    %902 = vmatpush1.bf16.msra.mxu0 %v839
    %903 = vmatprep.subr.bf16.mxu0 0
    %904 = vmatpush1.bf16.msra.mxu0 %v840
    %905 = vmatprep.subr.bf16.mxu0 0
    %906 = vmatpush1.bf16.msra.mxu0 %v841
    %907 = vmatprep.subr.bf16.mxu0 0
    %908 = vmatpush1.bf16.msra.mxu0 %v842
    %909 = vmatprep.subr.bf16.mxu0 0
    %910 = vmatpush1.bf16.msra.mxu0 %v843
    %911 = vmatprep.subr.bf16.mxu0 0
    %912 = vmatpush1.bf16.msra.mxu0 %v844
    %913 = vmatprep.subr.bf16.mxu0 0
    %914 = vmatpush1.bf16.msra.mxu0 %v845
    %915 = vmatprep.subr.bf16.mxu0 0
    %916 = vmatpush1.bf16.msra.mxu0 %v846
    %917 = vmatprep.subr.bf16.mxu0 0
    %918 = vmatpush1.bf16.msra.mxu0 %v847
    %919 = vmatprep.mubr.bf16.mxu0 %v809
    %920 = vmatmul.mubr.bf16.gmra.mrb[0].mxu0 %v808
    %v921 = vpop.f32.mrb[0].mxu0
    %v922 = vadd.f32 %v885, %v921
    %v923 = vpop.f32.mrb[0].mxu0
    %v924 = vpop.f32.mrb[0].mxu0
    %v925 = vadd.f32 %v885, %v924
    %v926 = vpop.f32.mrb[0].mxu0
    %927 = vmatprep.mubr.bf16.mxu0 %v815
    %928 = vmatmul.mubr.bf16.gmra.mrb[0].mxu0 %v814
    %v929 = vpop.f32.mrb[0].mxu0
    %v930 = vadd.f32 %v885, %v929
    %v931 = vpop.f32.mrb[0].mxu0
    %v932 = vpop.f32.mrb[0].mxu0
    %v933 = vadd.f32 %v885, %v932
    %v934 = vpop.f32.mrb[0].mxu0
    %935 = vmatprep.mubr.bf16.mxu0 %v821
    %936 = vmatmul.mubr.bf16.gmra.mrb[0].mxu0 %v820
    %v937 = vpop.f32.mrb[0].mxu0
    %v938 = vadd.f32 %v885, %v937
    %v939 = vpop.f32.mrb[0].mxu0
    %v940 = vpop.f32.mrb[0].mxu0
    %v941 = vadd.f32 %v885, %v940
    %v942 = vpop.f32.mrb[0].mxu0
    %943 = vmatprep.mubr.bf16.mxu0 %v827
    %944 = vmatmul.mubr.bf16.gmra.mrb[0].mxu0 %v826
    %v945 = vpop.f32.mrb[0].mxu0
    %v946 = vadd.f32 %v885, %v945
    %v947 = vpop.f32.mrb[0].mxu0
    %v948 = vpop.f32.mrb[0].mxu0
    %v949 = vadd.f32 %v885, %v948
    %v950 = vpop.f32.mrb[0].mxu0
    %951 = vdwg.mxu0
    %952 = vmatprep.subr.bf16.mxu0 0
    %953 = vmatpush1.bf16.msra.mxu0 %v848
    %954 = vmatprep.subr.bf16.mxu0 0
    %955 = vmatpush1.bf16.msra.mxu0 %v849
    %956 = vmatprep.subr.bf16.mxu0 0
    %957 = vmatpush1.bf16.msra.mxu0 %v850
    %958 = vmatprep.subr.bf16.mxu0 0
    %959 = vmatpush1.bf16.msra.mxu0 %v851
    %960 = vmatprep.subr.bf16.mxu0 0
    %961 = vmatpush1.bf16.msra.mxu0 %v852
    %962 = vmatprep.subr.bf16.mxu0 0
    %963 = vmatpush1.bf16.msra.mxu0 %v853
    %964 = vmatprep.subr.bf16.mxu0 0
    %965 = vmatpush1.bf16.msra.mxu0 %v854
    %966 = vmatprep.subr.bf16.mxu0 0
    %967 = vmatpush1.bf16.msra.mxu0 %v855
    %968 = vmatprep.subr.bf16.mxu0 0
    %969 = vmatpush1.bf16.msra.mxu0 %v856
    %970 = vmatprep.subr.bf16.mxu0 0
    %971 = vmatpush1.bf16.msra.mxu0 %v857
    %972 = vmatprep.subr.bf16.mxu0 0
    %973 = vmatpush1.bf16.msra.mxu0 %v858
    %974 = vmatprep.subr.bf16.mxu0 0
    %975 = vmatpush1.bf16.msra.mxu0 %v859
    %976 = vmatprep.subr.bf16.mxu0 0
    %977 = vmatpush1.bf16.msra.mxu0 %v860
    %978 = vmatprep.subr.bf16.mxu0 0
    %979 = vmatpush1.bf16.msra.mxu0 %v861
    %980 = vmatprep.subr.bf16.mxu0 0
    %981 = vmatpush1.bf16.msra.mxu0 %v862
    %982 = vmatprep.subr.bf16.mxu0 0
    %983 = vmatpush1.bf16.msra.mxu0 %v863
    %984 = vmatprep.mubr.bf16.mxu0 %v811
    %985 = vmatmul.mubr.bf16.gmra.mrb[0].mxu0 %v810
    %v986 = vpop.f32.mrb[0].mxu0
    %v987 = vadd.f32 %v922, %v986
    %v988 = vpop.f32.mrb[0].mxu0
    %v989 = vpop.f32.mrb[0].mxu0
    %v990 = vadd.f32 %v925, %v989
    %v991 = vpop.f32.mrb[0].mxu0
    %992 = vmatprep.mubr.bf16.mxu0 %v817
    %993 = vmatmul.mubr.bf16.gmra.mrb[0].mxu0 %v816
    %v994 = vpop.f32.mrb[0].mxu0
    %v995 = vadd.f32 %v930, %v994
    %v996 = vpop.f32.mrb[0].mxu0
    %v997 = vpop.f32.mrb[0].mxu0
    %v998 = vadd.f32 %v933, %v997
    %v999 = vpop.f32.mrb[0].mxu0
    %1000 = vmatprep.mubr.bf16.mxu0 %v823
    %1001 = vmatmul.mubr.bf16.gmra.mrb[0].mxu0 %v822
    %v1002 = vpop.f32.mrb[0].mxu0
    %v1003 = vadd.f32 %v938, %v1002
    %v1004 = vpop.f32.mrb[0].mxu0
    %v1005 = vpop.f32.mrb[0].mxu0
    %v1006 = vadd.f32 %v941, %v1005
    %v1007 = vpop.f32.mrb[0].mxu0
    %1008 = vmatprep.mubr.bf16.mxu0 %v829
    %1009 = vmatmul.mubr.bf16.gmra.mrb[0].mxu0 %v828
    %v1010 = vpop.f32.mrb[0].mxu0
    %v1011 = vadd.f32 %v946, %v1010
    %v1012 = vpop.f32.mrb[0].mxu0
    %v1013 = vpop.f32.mrb[0].mxu0
    %v1014 = vadd.f32 %v949, %v1013
    %v1015 = vpop.f32.mrb[0].mxu0
    %1016 = vdwg.mxu0
    %1017 = vmatprep.subr.bf16.mxu0 0
    %1018 = vmatpush1.bf16.msra.mxu0 %v864
    %1019 = vmatprep.subr.bf16.mxu0 0
    %1020 = vmatpush1.bf16.msra.mxu0 %v865
    %1021 = vmatprep.subr.bf16.mxu0 0
    %1022 = vmatpush1.bf16.msra.mxu0 %v866
    %1023 = vmatprep.subr.bf16.mxu0 0
    %1024 = vmatpush1.bf16.msra.mxu0 %v867
    %1025 = vmatprep.subr.bf16.mxu0 0
    %1026 = vmatpush1.bf16.msra.mxu0 %v868
    %1027 = vmatprep.subr.bf16.mxu0 0
    %1028 = vmatpush1.bf16.msra.mxu0 %v869
    %1029 = vmatprep.subr.bf16.mxu0 0
    %1030 = vmatpush1.bf16.msra.mxu0 %v870
    %1031 = vmatprep.subr.bf16.mxu0 0
    %1032 = vmatpush1.bf16.msra.mxu0 %v871
    %1033 = vmatprep.subr.bf16.mxu0 0
    %1034 = vmatpush1.bf16.msra.mxu0 %v872
    %1035 = vmatprep.subr.bf16.mxu0 0
    %1036 = vmatpush1.bf16.msra.mxu0 %v873
    %1037 = vmatprep.subr.bf16.mxu0 0
    %1038 = vmatpush1.bf16.msra.mxu0 %v874
    %1039 = vmatprep.subr.bf16.mxu0 0
    %1040 = vmatpush1.bf16.msra.mxu0 %v875
    %1041 = vmatprep.subr.bf16.mxu0 0
    %1042 = vmatpush1.bf16.msra.mxu0 %v876
    %1043 = vmatprep.subr.bf16.mxu0 0
    %1044 = vmatpush1.bf16.msra.mxu0 %v877
    %1045 = vmatprep.subr.bf16.mxu0 0
    %1046 = vmatpush1.bf16.msra.mxu0 %v878
    %1047 = vmatprep.subr.bf16.mxu0 0
    %1048 = vmatpush1.bf16.msra.mxu0 %v879
    %1049 = vmatprep.mubr.bf16.mxu0 %v813
    %1050 = vmatmul.mubr.bf16.gmra.mrb[0].mxu0 %v812
    %v1051 = vpop.f32.mrb[0].mxu0
    %v1052 = vadd.f32 %v987, %v1051
    %v1053 = vpop.f32.mrb[0].mxu0
    %v1054 = vpop.f32.mrb[0].mxu0
    %v1055 = vadd.f32 %v990, %v1054
    %v1056 = vpop.f32.mrb[0].mxu0
    %1057 = vmatprep.mubr.bf16.mxu0 %v819
    %1058 = vmatmul.mubr.bf16.gmra.mrb[0].mxu0 %v818
    %v1059 = vpop.f32.mrb[0].mxu0
    %v1060 = vadd.f32 %v995, %v1059
    %v1061 = vpop.f32.mrb[0].mxu0
    %v1062 = vpop.f32.mrb[0].mxu0
    %v1063 = vadd.f32 %v998, %v1062
    %v1064 = vpop.f32.mrb[0].mxu0
    %1065 = vmatprep.mubr.bf16.mxu0 %v825
    %1066 = vmatmul.mubr.bf16.gmra.mrb[0].mxu0 %v824
    %v1067 = vpop.f32.mrb[0].mxu0
    %v1068 = vadd.f32 %v1003, %v1067
    %v1069 = vpop.f32.mrb[0].mxu0
    %v1070 = vpop.f32.mrb[0].mxu0
    %v1071 = vadd.f32 %v1006, %v1070
    %v1072 = vpop.f32.mrb[0].mxu0
    %1073 = vmatprep.mubr.bf16.mxu0 %v831
    %1074 = vmatmul.mubr.bf16.gmra.mrb[0].mxu0 %v830
    %v1075 = vpop.f32.mrb[0].mxu0
    %v1076 = vadd.f32 %v1011, %v1075
    %v1077 = vpop.f32.mrb[0].mxu0
    %v1078 = vpop.f32.mrb[0].mxu0
    %v1079 = vadd.f32 %v1014, %v1078
    %v1080 = vpop.f32.mrb[0].mxu0
    %1081 = vdwg.mxu0
    %v1082 = vtanh.pop %v1052
    %v1083 = vtanh.pop %v1055
    %v1084 = vtanh.pop %v1060
    %v1085 = vtanh.pop %v1063
    %v1086 = vtanh.pop %v1068
    %v1087 = vtanh.pop %v1071
    %v1088 = vtanh.pop %v1076
    %v1089 = vtanh.pop %v1079
    %v1090 = vadd.f32 %v1082, 1.0
    %v1091 = vadd.f32 %v1083, 1.0
    %v1092 = vadd.f32 %v1084, 1.0
    %v1093 = vadd.f32 %v1085, 1.0
    %v1094 = vadd.f32 %v1086, 1.0
    %v1095 = vadd.f32 %v1087, 1.0
    %v1096 = vadd.f32 %v1088, 1.0
    %v1097 = vadd.f32 %v1089, 1.0
    %v1098 = vmul.f32 %v1090, 0.5
    %v1099 = vmul.f32 %v1091, 0.5
    %v1100 = vmul.f32 %v1092, 0.5
    %v1101 = vmul.f32 %v1093, 0.5
    %v1102 = vmul.f32 %v1094, 0.5
    %v1103 = vmul.f32 %v1095, 0.5
    %v1104 = vmul.f32 %v1096, 0.5
    %v1105 = vmul.f32 %v1097, 0.5
    %1106 = vst [vmem:[%s6] sm:$0xff] %v1098
    %1107 = vst [vmem:[%s6 + $0x8] sm:$0xff] %v1099
    %1108 = vst [vmem:[%s6 + $0x10] sm:$0xff] %v1100
    %1109 = vst [vmem:[%s6 + $0x18] sm:$0xff] %v1101
    %1110 = vst [vmem:[%s6 + $0x20] sm:$0xff] %v1102
    %1111 = vst [vmem:[%s6 + $0x28] sm:$0xff] %v1103
    %1112 = vst [vmem:[%s6 + $0x30] sm:$0xff] %v1104
    %1113 = vst [vmem:[%s6 + $0x38] sm:$0xff] %v1105
    // Predicated region
    $region30: #{vision_out_forward.1} parent=1 // pred_check
      _
    $region31: #{vision_out_forward.1} parent=1 // pred_check_branch
      %1115 = sbr.rel (0) target = $region33
    $region32: #{vision_out_forward.1} parent=1 // pred_region
      _
    $region33: #{vision_out_forward.1} parent=1 // pred_fallthru
      _
    // Predicated region
    $region34: #{vision_out_forward.1} parent=1 // pred_check
      _
    $region35: #{vision_out_forward.1} parent=1 // pred_check_branch
      %1117 = sbr.rel (0) target = $region37
    $region36: #{vision_out_forward.1} parent=1 // pred_region
      _
    $region37: #{vision_out_forward.1} parent=1 // pred_fallthru
      _
    %1118 = vsyncpa [#allocation7], 1
  %1119 = vsyncmov [#allocation4]
  %s1120 = vpop.sfrf %1119
  %p1121 = scmp.eq.s32.totalorder %s1120, 0
  %p1122 = pneg %p1121
  %1124 = shalt.err (%p1122)

</llo_original>
